<compile_context>
chip_gen: v7x
topology: tpu7x:2x2x1
jax: 0.10.0
libtpu: 0.0.40
codegen_flags: <defaults>
</compile_context>

<pallas_src>
import functools

import jax
import jax.numpy as jnp
from jax.experimental import pallas as pl
from jax.experimental.pallas import tpu as pltpu


# ---------------------------------------------------------------------------
# Kernels
# ---------------------------------------------------------------------------
def _linear_kernel_kfused(x_ref, w_ref, b_ref, o_ref):
    """Whole K resident in one tile: single MXU contraction, no accumulator."""
    acc = jnp.dot(x_ref[...], w_ref[...], preferred_element_type=jnp.float32)
    o_ref[...] = (acc + b_ref[...].astype(jnp.float32)).astype(o_ref.dtype)


def _linear_kernel_ktiled(x_ref, w_ref, b_ref, o_ref, acc_ref):
    """K as a grid reduction axis: f32 VMEM accumulator with init/finalize."""
    k = pl.program_id(2)

    @pl.when(k == 0)
    def _init():
        acc_ref[...] = jnp.zeros_like(acc_ref)

    acc_ref[...] += jnp.dot(x_ref[...], w_ref[...],
                            preferred_element_type=jnp.float32)

    @pl.when(k == pl.num_programs(2) - 1)
    def _finalize():
        o_ref[...] = (acc_ref[...] + b_ref[...].astype(jnp.float32)).astype(o_ref.dtype)


# ---------------------------------------------------------------------------
# Helpers
# ---------------------------------------------------------------------------
def _round_up(x, m):
    return ((x + m - 1) // m) * m


def _select_tile(dim, target, align):
    """Tile = multiple of `align`, no larger than the (rounded) target; the dim
    is padded UP to a multiple of the tile.  Never shrink the tile to make it
    divide the dim (that's what previously produced 128-wide tiles that
    half-fill a 256x256 MXU on v6e/v7x)."""
    tile = min(_round_up(target, align), _round_up(dim, align))
    return tile, _round_up(dim, tile)


def _vmem_capacity_bytes():
    try:
        cap = getattr(pltpu.get_tpu_info(), "vmem_capacity_bytes", None)
        if cap:
            return int(cap)
    except Exception:
        pass
    return 64 * 1024 * 1024  # safe floor: v7x per-TC VMEM


# ---------------------------------------------------------------------------
# Wrapper
# ---------------------------------------------------------------------------
@functools.partial(jax.jit, static_argnames=("tm_target", "tn_target", "tk_target"))
def linear_cls_forward(x, weight, bias, *, tm_target=512, tn_target=512, tk_target=1024):
    """x: [..., H_in], weight: [H_out, H_in] (PyTorch layout), bias: [H_out]."""
    orig_shape = x.shape
    h_in = orig_shape[-1]
    h_out, h_in_w = weight.shape
    assert h_in == h_in_w, "weight inner dim must match x last dim"

    x2d = x.reshape(-1, h_in)
    m = x2d.shape[0]
    dtype_size = jnp.dtype(x.dtype).itemsize

    vmem_cap = _vmem_capacity_bytes()

    # --- tile selection -----------------------------------------------------
    # M: if the whole (padded) M fits in one target tile, use it -> gm == 1 and
    # the weight matrix is streamed from HBM exactly once (decode / small batch).
    tm, m_pad = _select_tile(m, tm_target, 8)
    # N: lane-dense output tiles; 512 default keeps the 256x256 MXU full.
    tn, n_pad = _select_tile(h_out, tn_target, 128)

    # K: collapse the reduction into a single resident tile when the
    # double-buffered operand slabs still fit comfortably in VMEM (removes the
    # f32 accumulator RMW every K step + the reduction bookkeeping); otherwise
    # tile K and accumulate in scratch.
    k_full = _round_up(h_in, 128)
    fused_k_bytes = (2 * (tm * k_full + k_full * tn) + 2 * tm * tn + 2 * tn) * dtype_size
    if fused_k_bytes <= int(vmem_cap * 0.6):
        tk, k_pad = k_full, k_full
    else:
        tk, k_pad = _select_tile(h_in, tk_target, 128)

    gm, gn, gk = m_pad // tm, n_pad // tn, k_pad // tk

    # --- operand preparation --------------------------------------------------
    # Pre-transpose the weight ONCE to [H_in, H_out] so the kernel contracts
    # [tm,tk] @ [tk,tn] (no per-tile transposes competing with vmatmul for the
    # vector-extended VLIW slots).  Cache this across calls in a real model.
    w_t = weight.T
    if (k_pad, n_pad) != (h_in, h_out):
        w_t = jnp.pad(w_t, ((0, k_pad - h_in), (0, n_pad - h_out)))
    if (m_pad, k_pad) != (m, h_in):
        # TODO(synk): for large activations misaligned only on M, handle the
        # ragged final M block in-kernel instead of materializing a padded copy.
        x2d = jnp.pad(x2d, ((0, m_pad - m), (0, k_pad - h_in)))
    b2d = bias.reshape(1, h_out)
    if n_pad != h_out:
        b2d = jnp.pad(b2d, ((0, 0), (0, n_pad - h_out)))

    # --- cost / VMEM budgeting -------------------------------------------------
    cost = pl.CostEstimate(
        flops=2 * m_pad * n_pad * k_pad,
        transcendentals=0,
        # Actual tiled traffic: X re-read gn times, W re-read gm times, Y once.
        bytes_accessed=(gn * m_pad * k_pad + gm * n_pad * k_pad + m_pad * n_pad)
        * dtype_size,
    )

    acc_bytes = tm * tn * 4 if gk > 1 else 0
    vmem_need = (2 * (tm * tk + tk * tn + tm * tn + tn)) * dtype_size + acc_bytes
    # Per-generation limit: ~85% of capacity, never below the actual buffer need.
    vmem_limit = int(min(max(2 * vmem_need, 32 * 1024 * 1024), int(vmem_cap * 0.85)))
    vmem_limit = max(vmem_limit, vmem_need + (4 << 20))

    out_shape = jax.ShapeDtypeStruct((m_pad, n_pad), x.dtype)

    if gk == 1:
        # Single-K-tile schedule: pure parallel grid, no accumulator scratch.
        out = pl.pallas_call(
            _linear_kernel_kfused,
            out_shape=out_shape,
            grid_spec=pltpu.PrefetchScalarGridSpec(
                num_scalar_prefetch=0,
                grid=(gm, gn),
                in_specs=[
                    pl.BlockSpec((tm, tk), lambda i, j: (i, 0)),   # x tile
                    pl.BlockSpec((tk, tn), lambda i, j: (0, j)),   # w^T tile
                    pl.BlockSpec((1, tn), lambda i, j: (0, j)),    # bias tile
                ],
                out_specs=pl.BlockSpec((tm, tn), lambda i, j: (i, j)),
            ),
            compiler_params=pltpu.CompilerParams(
                dimension_semantics=("parallel", "parallel"),
                vmem_limit_bytes=vmem_limit,
            ),
            cost_estimate=cost,
        )(x2d, w_t, b2d)
    else:
        out = pl.pallas_call(
            _linear_kernel_ktiled,
            out_shape=out_shape,
            grid_spec=pltpu.PrefetchScalarGridSpec(
                num_scalar_prefetch=0,
                grid=(gm, gn, gk),
                in_specs=[
                    pl.BlockSpec((tm, tk), lambda i, j, k: (i, k)),  # x tile
                    pl.BlockSpec((tk, tn), lambda i, j, k: (k, j)),  # w^T tile
                    pl.BlockSpec((1, tn), lambda i, j, k: (0, j)),   # bias tile
                ],
                out_specs=pl.BlockSpec((tm, tn), lambda i, j, k: (i, j)),
                scratch_shapes=[pltpu.VMEM((tm, tn), jnp.float32)],
            ),
            compiler_params=pltpu.CompilerParams(
                dimension_semantics=("parallel", "parallel", "arbitrary"),
                vmem_limit_bytes=vmem_limit,
            ),
            cost_estimate=cost,
        )(x2d, w_t, b2d)

    out = out[:m, :h_out]
    return out.reshape(*orig_shape[:-1], h_out)


if __name__ == "__main__":
    batch, seq, hidden = 2, 8, 32

    key = jax.random.PRNGKey(0)
    kx, kw, kb = jax.random.split(key, 3)

    # Deterministic parameter init mimicking nn.Linear's uniform(-1/sqrt(H), 1/sqrt(H)).
    bound = 1.0 / (hidden ** 0.5)
    weight = jax.random.uniform(kw, (hidden, hidden), jnp.float32, -bound, bound)
    bias = jax.random.uniform(kb, (hidden,), jnp.float32, -bound, bound)

    x = jax.random.normal(kx, (batch, seq, hidden), jnp.float32)

    y = linear_cls_forward(x, weight, bias)
    y = jax.block_until_ready(y)

    # Reference check (plain JAX) to make sure semantics match nn.Linear.
    y_ref = x @ weight.T + bias
    assert y.shape == (batch, seq, hidden)
    assert jnp.allclose(y, y_ref, atol=1e-5, rtol=1e-5)

    print("KERNEL_OK")
</pallas_src>

<mosaic_0001>
module attributes {stable_mosaic.version = 11 : i64} {
  func.func @_linear_kernel_kfused(%arg0: i32, %arg1: i32, %arg2: memref<16x128xf32, #tpu.memory_space<vmem>>, %arg3: memref<128x128xf32, #tpu.memory_space<vmem>>, %arg4: memref<1x128xf32, #tpu.memory_space<vmem>>, %arg5: memref<16x128xf32, #tpu.memory_space<vmem>>) attributes {dimension_semantics = [#tpu.dimension_semantics<parallel>, #tpu.dimension_semantics<parallel>], iteration_bounds = array<i64: 1, 1>, scalar_prefetch = 0 : i64, scratch_operands = 0 : i64, tpu.core_type = #tpu.core_type<tc>, window_params = [{transform_indices = @transform_0, window_bounds = array<i64: 16, 128>}, {transform_indices = @transform_1, window_bounds = array<i64: 128, 128>}, {transform_indices = @transform_2, window_bounds = array<i64: 1, 128>}, {transform_indices = @transform_3, window_bounds = array<i64: 16, 128>}]} {
    %c0 = arith.constant 0 : index
    %c0_0 = arith.constant 0 : index
    %0 = vector.load %arg2[%c0, %c0_0] : memref<16x128xf32, #tpu.memory_space<vmem>>, vector<16x128xf32>
    %c0_1 = arith.constant 0 : index
    %c0_2 = arith.constant 0 : index
    %1 = vector.load %arg3[%c0_1, %c0_2] : memref<128x128xf32, #tpu.memory_space<vmem>>, vector<128x128xf32>
    %cst = arith.constant dense<0.000000e+00> : vector<16x128xf32>
    %2 = tpu.matmul %0, %1, %cst {dimension_numbers = #tpu.dot_dimension_numbers<[1], [0], [0], [1], [0, 0, 1, 1], [], []>} : vector<16x128xf32>, vector<128x128xf32>, vector<16x128xf32> -> vector<16x128xf32>
    %c0_3 = arith.constant 0 : index
    %c0_4 = arith.constant 0 : index
    %3 = vector.load %arg4[%c0_3, %c0_4] : memref<1x128xf32, #tpu.memory_space<vmem>>, vector<1x128xf32>
    %4 = vector.broadcast %3 : vector<1x128xf32> to vector<16x128xf32>
    %5 = arith.addf %2, %4 : vector<16x128xf32>
    %c0_5 = arith.constant 0 : index
    %c0_6 = arith.constant 0 : index
    %6 = vector.load %arg5[%c0_5, %c0_6] : memref<16x128xf32, #tpu.memory_space<vmem>>, vector<16x128xf32>
    tpu.vector_store %arg5[%c0_5, %c0_6], %5 {strides = array<i32>} : memref<16x128xf32, #tpu.memory_space<vmem>>, vector<16x128xf32>,
    return
  }
  func.func @transform_0(%arg0: i32, %arg1: i32) -> (i32, i32) {
    %c0_i32 = arith.constant 0 : i32
    %c0_i32_0 = arith.constant 0 : i32
    return %arg0, %c0_i32 : i32, i32
  }
  func.func @transform_1(%arg0: i32, %arg1: i32) -> (i32, i32) {
    %c0_i32 = arith.constant 0 : i32
    %c0_i32_0 = arith.constant 0 : i32
    return %c0_i32, %arg1 : i32, i32
  }
  func.func @transform_2(%arg0: i32, %arg1: i32) -> (i32, i32) {
    %c0_i32 = arith.constant 0 : i32
    %c0_i32_0 = arith.constant 0 : i32
    return %c0_i32, %arg1 : i32, i32
  }
  func.func @transform_3(%arg0: i32, %arg1: i32) -> (i32, i32) {
    %c0_i32 = arith.constant 0 : i32
    return %arg0, %arg1 : i32, i32
  }
}

</mosaic_0001>

<llo_original>
// kernel: linear_cls_forward.1
$region0: #{linear_cls_forward.1}
  #allocation0 [shape = 'u32[]', space=smem, size = 0x4, offset = 0x4, fixed_abs, tag = 'smem constant byte address 0x4 - core index']
  #allocation1 [shape = 'u32[144,128]{1,0:T(1,128)}', space=vmem, size = 0x12000, scoped, tag = 'internal scratch']
  %s0 = inlined_call_operand.vmem [shape: f32[16,128], index: 0, kind: input, shape index: {}]
  %s1 = inlined_call_operand.vmem [shape: f32[128,128], index: 1, kind: input, shape index: {}]
  %s2 = inlined_call_operand.vmem [shape: f32[1,128], index: 2, kind: input, shape index: {}]
  %s3 = inlined_call_operand.vmem [shape: f32[16,128], index: 3, kind: output, shape index: {}]
  %s4 = sld [smem:[#allocation0]]
  $region22: #{linear_cls_forward.1} parent=0
    _
  %s6 = ssub.s32 1, %s4
  %s7 = scalar_select 0, %s6, %s4
  // Predicated region
  $region2: #{linear_cls_forward.1} parent=0 // pred_check
    _
  $region3: #{linear_cls_forward.1} parent=0 // pred_check_branch
    %9 = sbr.rel (0) target = $region5
  $region4: #{linear_cls_forward.1} parent=0 // pred_region
    _
  $region5: #{linear_cls_forward.1} parent=0 // pred_fallthru
    _
  // Predicated region
  $region6: #{linear_cls_forward.1} parent=0 // pred_check
    _
  $region7: #{linear_cls_forward.1} parent=0 // pred_check_branch
    %11 = sbr.rel (0) target = $region9
  $region8: #{linear_cls_forward.1} parent=0 // pred_region
    _
  $region9: #{linear_cls_forward.1} parent=0 // pred_fallthru
    _
  // Predicated region
  $region10: #{linear_cls_forward.1} parent=0 // pred_check
    _
  $region11: #{linear_cls_forward.1} parent=0 // pred_check_branch
    %13 = sbr.rel (0) target = $region13
  $region12: #{linear_cls_forward.1} parent=0 // pred_region
    _
  $region13: #{linear_cls_forward.1} parent=0 // pred_fallthru
    _
  %v14 = vld [vmem:[%s0] sm:$0xff]
  %v15 = vld [vmem:[%s0 + $0x8] sm:$0xff]
  %v16 = vld [vmem:[%s1] sm:$0xff]
  %v17 = vld [vmem:[%s1 + $0x8] sm:$0xff]
  %v18 = vld [vmem:[%s1 + $0x10] sm:$0xff]
  %v19 = vld [vmem:[%s1 + $0x18] sm:$0xff]
  %v20 = vld [vmem:[%s1 + $0x20] sm:$0xff]
  %v21 = vld [vmem:[%s1 + $0x28] sm:$0xff]
  %v22 = vld [vmem:[%s1 + $0x30] sm:$0xff]
  %v23 = vld [vmem:[%s1 + $0x38] sm:$0xff]
  %v24 = vld [vmem:[%s1 + $0x40] sm:$0xff]
  %v25 = vld [vmem:[%s1 + $0x48] sm:$0xff]
  %v26 = vld [vmem:[%s1 + $0x50] sm:$0xff]
  %v27 = vld [vmem:[%s1 + $0x58] sm:$0xff]
  %v28 = vld [vmem:[%s1 + $0x60] sm:$0xff]
  %v29 = vld [vmem:[%s1 + $0x68] sm:$0xff]
  %v30 = vld [vmem:[%s1 + $0x70] sm:$0xff]
  %v31 = vld [vmem:[%s1 + $0x78] sm:$0xff]
  %v32 = vld [vmem:[%s2] sm:$0x1]
  %v34 = vlaneseq
  %v35 = vshrl.u32 %v34, 7
  %v36 = vsub.s32 0, %v35
  %v37 = vrot.slane %v32, %v36
  %39 = vmatprep.subr.mxu0 0.0
  %40 = vmatpush1.msra.mxu0 %v16
  %41 = vmatprep.subr.mxu0 0.0
  %42 = vmatpush1.msra.mxu0 %v17
  %43 = vmatprep.subr.mxu0 0.0
  %44 = vmatpush1.msra.mxu0 %v18
  %45 = vmatprep.subr.mxu0 0.0
  %46 = vmatpush1.msra.mxu0 %v19
  %47 = vmatprep.subr.mxu0 0.0
  %48 = vmatpush1.msra.mxu0 %v20
  %49 = vmatprep.subr.mxu0 0.0
  %50 = vmatpush1.msra.mxu0 %v21
  %51 = vmatprep.subr.mxu0 0.0
  %52 = vmatpush1.msra.mxu0 %v22
  %53 = vmatprep.subr.mxu0 0.0
  %54 = vmatpush1.msra.mxu0 %v23
  %55 = vmatprep.subr.mxu0 0.0
  %56 = vmatpush1.msra.mxu0 %v24
  %57 = vmatprep.subr.mxu0 0.0
  %58 = vmatpush1.msra.mxu0 %v25
  %59 = vmatprep.subr.mxu0 0.0
  %60 = vmatpush1.msra.mxu0 %v26
  %61 = vmatprep.subr.mxu0 0.0
  %62 = vmatpush1.msra.mxu0 %v27
  %63 = vmatprep.subr.mxu0 0.0
  %64 = vmatpush1.msra.mxu0 %v28
  %65 = vmatprep.subr.mxu0 0.0
  %66 = vmatpush1.msra.mxu0 %v29
  %67 = vmatprep.subr.mxu0 0.0
  %68 = vmatpush1.msra.mxu0 %v30
  %69 = vmatprep.subr.mxu0 0.0
  %70 = vmatpush1.msra.mxu0 %v31
  %71 = vmatprep.subr.mxu0 0.0
  %72 = vmatpush1.msra.mxu0 0.0
  %73 = vmatprep.subr.mxu0 0.0
  %74 = vmatpush1.msra.mxu0 0.0
  %75 = vmatprep.subr.mxu0 0.0
  %76 = vmatpush1.msra.mxu0 0.0
  %77 = vmatprep.subr.mxu0 0.0
  %78 = vmatpush1.msra.mxu0 0.0
  %79 = vmatprep.subr.mxu0 0.0
  %80 = vmatpush1.msra.mxu0 0.0
  %81 = vmatprep.subr.mxu0 0.0
  %82 = vmatpush1.msra.mxu0 0.0
  %83 = vmatprep.subr.mxu0 0.0
  %84 = vmatpush1.msra.mxu0 0.0
  %85 = vmatprep.subr.mxu0 0.0
  %86 = vmatpush1.msra.mxu0 0.0
  %87 = vmatprep.subr.mxu0 0.0
  %88 = vmatpush1.msra.mxu0 0.0
  %89 = vmatprep.subr.mxu0 0.0
  %90 = vmatpush1.msra.mxu0 0.0
  %91 = vmatprep.subr.mxu0 0.0
  %92 = vmatpush1.msra.mxu0 0.0
  %93 = vmatprep.subr.mxu0 0.0
  %94 = vmatpush1.msra.mxu0 0.0
  %95 = vmatprep.subr.mxu0 0.0
  %96 = vmatpush1.msra.mxu0 0.0
  %97 = vmatprep.subr.mxu0 0.0
  %98 = vmatpush1.msra.mxu0 0.0
  %99 = vmatprep.subr.mxu0 0.0
  %100 = vmatpush1.msra.mxu0 0.0
  %101 = vmatprep.subr.mxu0 0.0
  %102 = vmatpush1.msra.mxu0 0.0
  %103 = vmatprep.mubr.f32.mxu0 0.0
  %104 = vmatmul.mubr.f32.gmra.mrb[0].mxu0 %v14
  %v105 = vpop.f32.mrb[0].mxu0
  %v106 = vadd.f32 %v37, %v105
  %v107 = vpop.f32.mrb[0].mxu0
  %108 = vmatprep.mubr.f32.mxu0 0.0
  %109 = vmatmul.mubr.f32.gmra.mrb[0].mxu0 %v15
  %v110 = vpop.f32.mrb[0].mxu0
  %v111 = vadd.f32 %v37, %v110
  %v112 = vpop.f32.mrb[0].mxu0
  %113 = vdwg.mxu0
  %114 = vst [vmem:[%s3] sm:$0xff] %v106
  %115 = vst [vmem:[%s3 + $0x8] sm:$0xff] %v111
  // Predicated region
  $region14: #{linear_cls_forward.1} parent=0 // pred_check
    _
  $region15: #{linear_cls_forward.1} parent=0 // pred_check_branch
    %117 = sbr.rel (0) target = $region17
  $region16: #{linear_cls_forward.1} parent=0 // pred_region
    _
  $region17: #{linear_cls_forward.1} parent=0 // pred_fallthru
    _
  // Predicated region
  $region18: #{linear_cls_forward.1} parent=0 // pred_check
    _
  $region19: #{linear_cls_forward.1} parent=0 // pred_check_branch
    %119 = sbr.rel (0) target = $region21
  $region20: #{linear_cls_forward.1} parent=0 // pred_region
    _
  $region21: #{linear_cls_forward.1} parent=0 // pred_fallthru
    _

</llo_original>
